<compile_context>
chip_gen: v5e
topology: v5e:2x2
jax: 0.10.0
libtpu: 0.0.40
codegen_flags: <defaults>
</compile_context>

<pallas_src>
import functools

import jax
import jax.numpy as jnp
from jax.experimental import pallas as pl
from jax.experimental.pallas import tpu as pltpu


def _round_up(x, m):
    return ((x + m - 1) // m) * m


def _pick_tile(n, unit, max_tile):
    """Largest multiple-of-`unit` tile <= max_tile that minimizes padding of n."""
    max_tile = max(unit, (max_tile // unit) * unit)
    n_up = _round_up(max(n, 1), unit)
    hi = min(max_tile, n_up)
    best_t, best_pad = unit, _round_up(n, unit)
    for t in range(unit, hi + 1, unit):
        pad = _round_up(n, t)
        if pad < best_pad or (pad == best_pad and t > best_t):
            best_t, best_pad = t, pad
    return best_t, best_pad


def _vmem_limit_bytes():
    """Per-generation scoped-VMEM limit with headroom (v7x: 64 MiB physical)."""
    try:
        cap = int(pltpu.get_tpu_info().vmem_capacity_bytes)
    except Exception:
        cap = 64 * 1024 * 1024  # conservative (v7x physical VMEM)
    return max(32 * 1024 * 1024, min(cap - 8 * 1024 * 1024, 100 * 1024 * 1024))


def _rbf_kernel(x_ref, xx_ref, ct_ref, cw_ref, o_ref):
    x = x_ref[...]                                   # (tm, Fp)  f32
    xx = xx_ref[...]                                 # (tm, 1)   precomputed ||x||^2
    ct = ct_ref[...]                                 # (Fp, tn)  centers^T
    cw = cw_ref[...]                                 # (2, tn)   row0: ||c||^2, row1: w/3
    cc = cw[0:1, :]
    w = cw[1:2, :]

    # ||x - c||^2 = ||x||^2 + ||c||^2 - 2 x.c   (x.c on the MXU, lane-dense N)
    xc = jnp.dot(x, ct, preferred_element_type=jnp.float32)       # (tm, tn)
    d2 = jnp.maximum(xx + cc - 2.0 * xc, 0.0)
    d = jnp.sqrt(d2)                                              # torch.norm(dim=2)

    # (1 - d)^6 * (35 d^2 + 18 d + 3) / 3, with 1/3 folded into w.
    one_minus_d = 1.0 - d
    t2 = one_minus_d * one_minus_d
    t6 = t2 * t2 * t2
    poly = (35.0 * d + 18.0) * d + 3.0
    o_ref[...] = (t6 * poly * w).astype(o_ref.dtype)


@functools.partial(jax.jit, static_argnames=("tm_max", "tn_max", "force_tiled"))
def rbf_random_forward(x, centers, weights, *, tm_max=512, tn_max=1024,
                       force_tiled=False):
    """x: (B, F), centers: (O, F), weights: (O,)  ->  (B, O) f32."""
    B, F = x.shape
    O, F2 = centers.shape
    assert F == F2 and weights.shape == (O,)

    F_pad = _round_up(F, 128)
    O_pad_min = _round_up(O, 128)

    vmem_limit = _vmem_limit_bytes()
    budget = int(vmem_limit * 0.8)                 # headroom inside declared limit

    # --- choose path & tile sizes (all static shape work, trace time) --------
    param_bytes = 4 * (F_pad * O_pad_min + 2 * O_pad_min)       # resident params
    per_row_res = 8 * (F_pad + 1 + O_pad_min)                   # x/xx/out, dbl-buf
    tm_fit_res = (budget - param_bytes) // per_row_res if budget > param_bytes else 0
    tm_fit_res = (tm_fit_res // 8) * 8
    use_resident = (not force_tiled) and tm_fit_res >= 8

    if use_resident:
        O_pad = O_pad_min
        tn = O_pad
        tm, B_pad = _pick_tile(B, 8, min(max(8, tm_max), tm_fit_res))
    else:
        tn, O_pad = _pick_tile(O, 128, max(128, tn_max))
        fixed = 8 * (F_pad + 2) * tn               # ct + cc/w tiles, dbl-buffered
        while fixed > budget and tn > 128:
            tn = max(128, ((tn // 2) // 128) * 128)
            O_pad = _round_up(O, tn)
            fixed = 8 * (F_pad + 2) * tn
        per_row = 8 * (F_pad + 1 + tn)
        tm_fit = (budget - fixed) // per_row if budget > fixed else 8
        tm_fit = max(8, (tm_fit // 8) * 8)
        # TODO(synk): if even (tm=8, tn=128) exceeds VMEM (F_pad ≳ 45k), a K-axis
        # (reduction over in_features) grid with an f32 accumulator is required.
        tm, B_pad = _pick_tile(B, 8, min(max(8, tm_max), tm_fit))

    # --- wrapper-side preprocessing (all static parameter work hoisted) ------
    x_p = jnp.zeros((B_pad, F_pad), jnp.float32).at[:B, :F].set(
        x.astype(jnp.float32))
    xx_p = jnp.sum(x_p * x_p, axis=-1, keepdims=True)            # (B_pad, 1)

    c_p = jnp.zeros((O_pad, F_pad), jnp.float32).at[:O, :F].set(
        centers.astype(jnp.float32))
    ct_p = c_p.T                                                  # (F_pad, O_pad)
    cc_row = jnp.sum(c_p * c_p, axis=-1)                          # (O_pad,)
    w_row = jnp.zeros((O_pad,), jnp.float32).at[:O].set(
        weights.astype(jnp.float32) / 3.0)                        # fold 1/3
    cw_p = jnp.stack([cc_row, w_row], axis=0)                     # (2, O_pad)

    cost = pl.CostEstimate(
        flops=2 * B_pad * O_pad * F_pad + 12 * B_pad * O_pad,
        transcendentals=B_pad * O_pad,
        bytes_accessed=4 * (B_pad * F_pad + B_pad + F_pad * O_pad
                            + 2 * O_pad + B_pad * O_pad),
    )
    out_shape = jax.ShapeDtypeStruct((B_pad, O_pad), jnp.float32)

    if use_resident:
        # Parameters fully resident in VMEM; grid over batch tiles only.
        out_p = pl.pallas_call(
            _rbf_kernel,
            out_shape=out_shape,
            grid=(B_pad // tm,),
            in_specs=[
                pl.BlockSpec((tm, F_pad), lambda i: (i, 0)),      # x tile
                pl.BlockSpec((tm, 1), lambda i: (i, 0)),          # ||x||^2 tile
                pl.BlockSpec((F_pad, O_pad), lambda i: (0, 0)),   # centers^T (resident)
                pl.BlockSpec((2, O_pad), lambda i: (0, 0)),       # ||c||^2 & w/3 (resident)
            ],
            out_specs=pl.BlockSpec((tm, O_pad), lambda i: (i, 0)),
            compiler_params=pltpu.CompilerParams(
                dimension_semantics=("parallel",),
                vmem_limit_bytes=vmem_limit,
            ),
            cost_estimate=cost,
        )(x_p, xx_p, ct_p, cw_p)
    else:
        # Output-tile axis OUTER, batch INNER: centers^T tile stays resident
        # across the inner batch loop; only the small x tile is restreamed.
        out_p = pl.pallas_call(
            _rbf_kernel,
            out_shape=out_shape,
            grid=(O_pad // tn, B_pad // tm),
            in_specs=[
                pl.BlockSpec((tm, F_pad), lambda j, i: (i, 0)),   # x tile
                pl.BlockSpec((tm, 1), lambda j, i: (i, 0)),       # ||x||^2 tile
                pl.BlockSpec((F_pad, tn), lambda j, i: (0, j)),   # centers^T tile
                pl.BlockSpec((2, tn), lambda j, i: (0, j)),       # ||c||^2 & w/3 tile
            ],
            out_specs=pl.BlockSpec((tm, tn), lambda j, i: (i, j)),
            compiler_params=pltpu.CompilerParams(
                dimension_semantics=("parallel", "parallel"),
                vmem_limit_bytes=vmem_limit,
            ),
            cost_estimate=cost,
        )(x_p, xx_p, ct_p, cw_p)

    return out_p[:B, :O]


def rbf_random_reference(x, centers, weights):
    diff = x[:, None, :] - centers[None, :, :]          # (B, O, F)
    d = jnp.sqrt(jnp.sum(diff * diff, axis=2))          # (B, O)
    rbf = (1.0 - d) ** 6 * (35.0 * d * d + 18.0 * d + 3.0) / 3.0
    return rbf * weights[None, :]


if __name__ == "__main__":
    key = jax.random.PRNGKey(0)
    kx, kc, kw, kx2, kc2, kw2 = jax.random.split(key, 6)

    # Small shapes consistent with the module ("uniform_(-1, 1)" params).
    batch, in_features, out_features = 8, 16, 32
    centers = jax.random.uniform(kc, (out_features, in_features),
                                 minval=-1.0, maxval=1.0, dtype=jnp.float32)
    weights = jax.random.uniform(kw, (out_features,),
                                 minval=-1.0, maxval=1.0, dtype=jnp.float32)
    x = jax.random.uniform(kx, (batch, in_features),
                           minval=-1.0, maxval=1.0, dtype=jnp.float32)

    out = jax.block_until_ready(rbf_random_forward(x, centers, weights))
    ref = rbf_random_reference(x, centers, weights)
    assert out.shape == (batch, out_features)
    assert jnp.allclose(out, ref, atol=1e-4, rtol=1e-4), "mismatch (resident path)"

    # Multi-tile / padded-edge check exercising the tiled (non-resident) path.
    B2, F2, O2 = 300, 33, 257
    centers2 = jax.random.uniform(kc2, (O2, F2), minval=-1.0, maxval=1.0,
                                  dtype=jnp.float32)
    weights2 = jax.random.uniform(kw2, (O2,), minval=-1.0, maxval=1.0,
                                  dtype=jnp.float32)
    x2 = jax.random.uniform(kx2, (B2, F2), minval=-1.0, maxval=1.0,
                            dtype=jnp.float32)
    out2 = jax.block_until_ready(
        rbf_random_forward(x2, centers2, weights2,
                           tm_max=64, tn_max=128, force_tiled=True))
    ref2 = rbf_random_reference(x2, centers2, weights2)
    assert out2.shape == (B2, O2)
    assert jnp.allclose(out2, ref2, atol=1e-3, rtol=1e-4), "mismatch (tiled path)"

    print("KERNEL_OK")
</pallas_src>

<mosaic_0001>
module attributes {stable_mosaic.version = 11 : i64} {
  func.func @_rbf_kernel(%arg0: i32, %arg1: memref<8x128xf32, #tpu.memory_space<vmem>>, %arg2: memref<8x1xf32, #tpu.memory_space<vmem>>, %arg3: memref<128x128xf32, #tpu.memory_space<vmem>>, %arg4: memref<2x128xf32, #tpu.memory_space<vmem>>, %arg5: memref<8x128xf32, #tpu.memory_space<vmem>>) attributes {dimension_semantics = [#tpu.dimension_semantics<parallel>], iteration_bounds = array<i64: 1>, scalar_prefetch = 0 : i64, scratch_operands = 0 : i64, tpu.core_type = #tpu.core_type<tc>, window_params = [{transform_indices = @transform_0, window_bounds = array<i64: 8, 128>}, {transform_indices = @transform_1, window_bounds = array<i64: 8, 1>}, {pipeline_mode = #tpu.pipeline_mode<synchronous>, transform_indices = @transform_2, window_bounds = array<i64: 128, 128>}, {pipeline_mode = #tpu.pipeline_mode<synchronous>, transform_indices = @transform_3, window_bounds = array<i64: 2, 128>}, {transform_indices = @transform_4, window_bounds = array<i64: 8, 128>}]} {
    %c0 = arith.constant 0 : index
    %c0_0 = arith.constant 0 : index
    %0 = vector.load %arg1[%c0, %c0_0] : memref<8x128xf32, #tpu.memory_space<vmem>>, vector<8x128xf32>
    %c0_1 = arith.constant 0 : index
    %c0_2 = arith.constant 0 : index
    %1 = vector.load %arg2[%c0_1, %c0_2] : memref<8x1xf32, #tpu.memory_space<vmem>>, vector<8x1xf32>
    %c0_3 = arith.constant 0 : index
    %c0_4 = arith.constant 0 : index
    %2 = vector.load %arg3[%c0_3, %c0_4] : memref<128x128xf32, #tpu.memory_space<vmem>>, vector<128x128xf32>
    %c0_5 = arith.constant 0 : index
    %c0_6 = arith.constant 0 : index
    %3 = vector.load %arg4[%c0_5, %c0_6] : memref<2x128xf32, #tpu.memory_space<vmem>>, vector<2x128xf32>
    %4 = vector.extract_strided_slice %3 {offsets = [0, 0], sizes = [1, 128], strides = [1, 1]} : vector<2x128xf32> to vector<1x128xf32>
    %5 = vector.extract_strided_slice %3 {offsets = [1, 0], sizes = [1, 128], strides = [1, 1]} : vector<2x128xf32> to vector<1x128xf32>
    %cst = arith.constant dense<0.000000e+00> : vector<8x128xf32>
    %6 = tpu.matmul %0, %2, %cst {dimension_numbers = #tpu.dot_dimension_numbers<[1], [0], [0], [1], [0, 0, 1, 1], [], []>} : vector<8x128xf32>, vector<128x128xf32>, vector<8x128xf32> -> vector<8x128xf32>
    %7 = vector.broadcast %1 : vector<8x1xf32> to vector<8x128xf32>
    %8 = vector.broadcast %4 : vector<1x128xf32> to vector<8x128xf32>
    %9 = arith.addf %7, %8 : vector<8x128xf32>
    %cst_7 = arith.constant 2.000000e+00 : f32
    %10 = vector.broadcast %cst_7 : f32 to vector<8x128xf32>
    %11 = arith.mulf %10, %6 : vector<8x128xf32>
    %12 = arith.subf %9, %11 : vector<8x128xf32>
    %cst_8 = arith.constant 0.000000e+00 : f32
    %13 = vector.broadcast %cst_8 : f32 to vector<8x128xf32>
    %14 = arith.maximumf %12, %13 : vector<8x128xf32>
    %15 = math.sqrt %14 : vector<8x128xf32>
    %cst_9 = arith.constant 1.000000e+00 : f32
    %16 = vector.broadcast %cst_9 : f32 to vector<8x128xf32>
    %17 = arith.subf %16, %15 : vector<8x128xf32>
    %18 = arith.mulf %17, %17 : vector<8x128xf32>
    %19 = arith.mulf %18, %18 : vector<8x128xf32>
    %20 = arith.mulf %19, %18 : vector<8x128xf32>
    %cst_10 = arith.constant 3.500000e+01 : f32
    %21 = vector.broadcast %cst_10 : f32 to vector<8x128xf32>
    %22 = arith.mulf %21, %15 : vector<8x128xf32>
    %cst_11 = arith.constant 1.800000e+01 : f32
    %23 = vector.broadcast %cst_11 : f32 to vector<8x128xf32>
    %24 = arith.addf %22, %23 : vector<8x128xf32>
    %25 = arith.mulf %24, %15 : vector<8x128xf32>
    %cst_12 = arith.constant 3.000000e+00 : f32
    %26 = vector.broadcast %cst_12 : f32 to vector<8x128xf32>
    %27 = arith.addf %25, %26 : vector<8x128xf32>
    %28 = arith.mulf %20, %27 : vector<8x128xf32>
    %29 = vector.broadcast %5 : vector<1x128xf32> to vector<8x128xf32>
    %30 = arith.mulf %28, %29 : vector<8x128xf32>
    %c0_13 = arith.constant 0 : index
    %c0_14 = arith.constant 0 : index
    %31 = vector.load %arg5[%c0_13, %c0_14] : memref<8x128xf32, #tpu.memory_space<vmem>>, vector<8x128xf32>
    tpu.vector_store %arg5[%c0_13, %c0_14], %30 {strides = array<i32>} : memref<8x128xf32, #tpu.memory_space<vmem>>, vector<8x128xf32>,
    return
  }
  func.func @transform_0(%arg0: i32) -> (i32, i32) {
    %c0_i32 = arith.constant 0 : i32
    %c0_i32_0 = arith.constant 0 : i32
    return %arg0, %c0_i32 : i32, i32
  }
  func.func @transform_1(%arg0: i32) -> (i32, i32) {
    %c0_i32 = arith.constant 0 : i32
    %c0_i32_0 = arith.constant 0 : i32
    return %arg0, %c0_i32 : i32, i32
  }
  func.func @transform_2(%arg0: i32) -> (i32, i32) {
    %c0_i32 = arith.constant 0 : i32
    %c0_i32_0 = arith.constant 0 : i32
    %c0_i32_1 = arith.constant 0 : i32
    return %c0_i32, %c0_i32_0 : i32, i32
  }
  func.func @transform_3(%arg0: i32) -> (i32, i32) {
    %c0_i32 = arith.constant 0 : i32
    %c0_i32_0 = arith.constant 0 : i32
    %c0_i32_1 = arith.constant 0 : i32
    return %c0_i32, %c0_i32_0 : i32, i32
  }
  func.func @transform_4(%arg0: i32) -> (i32, i32) {
    %c0_i32 = arith.constant 0 : i32
    %c0_i32_0 = arith.constant 0 : i32
    return %arg0, %c0_i32 : i32, i32
  }
}

</mosaic_0001>

<llo_original>
// kernel: rbf_random_forward.1
$region0: #{rbf_random_forward.1}
  #allocation0 [shape = 'u32[]', space=smem, size = 0x4, offset = 0x4, fixed_abs, tag = 'smem constant byte address 0x4 - core index']
  #allocation1 [shape = 'u32[72,128]{1,0:T(1,128)}', space=vmem, size = 0x9000, scoped, tag = 'internal scratch']
  %s0 = inlined_call_operand.vmem [shape: f32[8,128], index: 0, kind: input, shape index: {}]
  %s1 = inlined_call_operand.vmem [shape: f32[8,1], index: 1, kind: input, shape index: {}]
  %s2 = inlined_call_operand.vmem [shape: f32[128,128], index: 2, kind: input, shape index: {}]
  %s3 = inlined_call_operand.vmem [shape: f32[2,128], index: 3, kind: input, shape index: {}]
  %s4 = inlined_call_operand.hbm [shape: f32[8,128], index: 4, kind: output, shape index: {}]
  %s5 = sld [smem:[#allocation0]]
  $region26: #{rbf_random_forward.1} parent=0
    _
  %s7 = ssub.s32 1, %s5
  %s8 = scalar_select 0, %s7, %s5
  $region1: #{rbf_random_forward.1} parent=0
    #allocation2 [shape = 'u8[4096]{0}', space=vmem, size = 0x1000, scoped, tag = 'output window, operand 0, single buffered']
    #allocation3 [shape = 's32[1]{0}', space=sflag, size = 0x4, scoped, tag = 'scoped memory for rbf_random_forward.1']
    %9 = vsyncpa [#allocation3], 0
    // Predicated region
    $region2: #{rbf_random_forward.1} parent=1 // pred_check
      _
    $region3: #{rbf_random_forward.1} parent=1 // pred_check_branch
      %11 = sbr.rel (0) target = $region5
    $region4: #{rbf_random_forward.1} parent=1 // pred_region
      _
    $region5: #{rbf_random_forward.1} parent=1 // pred_fallthru
      _
    // Predicated region
    $region6: #{rbf_random_forward.1} parent=1 // pred_check
      _
    $region7: #{rbf_random_forward.1} parent=1 // pred_check_branch
      %13 = sbr.rel (0) target = $region9
    $region8: #{rbf_random_forward.1} parent=1 // pred_region
      _
    $region9: #{rbf_random_forward.1} parent=1 // pred_fallthru
      _
    // Predicated region
    $region10: #{rbf_random_forward.1} parent=1 // pred_check
      _
    $region11: #{rbf_random_forward.1} parent=1 // pred_check_branch
      %15 = sbr.rel (0) target = $region13
    $region12: #{rbf_random_forward.1} parent=1 // pred_region
      _
    $region13: #{rbf_random_forward.1} parent=1 // pred_fallthru
      _
    // Predicated region
    $region14: #{rbf_random_forward.1} parent=1 // pred_check
      _
    $region15: #{rbf_random_forward.1} parent=1 // pred_check_branch
      %17 = sbr.rel (0) target = $region17
    $region16: #{rbf_random_forward.1} parent=1 // pred_region
      _
    $region17: #{rbf_random_forward.1} parent=1 // pred_fallthru
      _
    %v18 = vld [vmem:[%s0] sm:$0xff]
    %v19 = vld [vmem:[%s1] sm:$0xff]
    %v20 = vld [vmem:[%s2] sm:$0xff]
    %v21 = vld [vmem:[%s2 + $0x8] sm:$0xff]
    %v22 = vld [vmem:[%s2 + $0x10] sm:$0xff]
    %v23 = vld [vmem:[%s2 + $0x18] sm:$0xff]
    %v24 = vld [vmem:[%s2 + $0x20] sm:$0xff]
    %v25 = vld [vmem:[%s2 + $0x28] sm:$0xff]
    %v26 = vld [vmem:[%s2 + $0x30] sm:$0xff]
    %v27 = vld [vmem:[%s2 + $0x38] sm:$0xff]
    %v28 = vld [vmem:[%s2 + $0x40] sm:$0xff]
    %v29 = vld [vmem:[%s2 + $0x48] sm:$0xff]
    %v30 = vld [vmem:[%s2 + $0x50] sm:$0xff]
    %v31 = vld [vmem:[%s2 + $0x58] sm:$0xff]
    %v32 = vld [vmem:[%s2 + $0x60] sm:$0xff]
    %v33 = vld [vmem:[%s2 + $0x68] sm:$0xff]
    %v34 = vld [vmem:[%s2 + $0x70] sm:$0xff]
    %v35 = vld [vmem:[%s2 + $0x78] sm:$0xff]
    %v36 = vld [vmem:[%s3] sm:$0x3]
    %37 = vmatpush.msra.mxu0 %v35
    %38 = vmatpush.msra.mxu0 %v34
    %39 = vmatpush.msra.mxu0 %v33
    %40 = vmatpush.msra.mxu0 %v32
    %41 = vmatpush.msra.mxu0 %v31
    %42 = vmatpush.msra.mxu0 %v30
    %43 = vmatpush.msra.mxu0 %v29
    %44 = vmatpush.msra.mxu0 %v28
    %45 = vmatpush.msra.mxu0 %v27
    %46 = vmatpush.msra.mxu0 %v26
    %47 = vmatpush.msra.mxu0 %v25
    %48 = vmatpush.msra.mxu0 %v24
    %49 = vmatpush.msra.mxu0 %v23
    %50 = vmatpush.msra.mxu0 %v22
    %51 = vmatpush.msra.mxu0 %v21
    %52 = vmatpush.msra.mxu0 %v20
    %53 = vmatmul.f32.gmra.mxu0 %v18
    %v54 = vpop.f32.mrf.mxu0
    %v55 = vadd.f32 0.0, %v54
    %56 = vdwg.mxu0
    %58 = vset.pattern.permute.xlu0 0
    %59 = vperm.xlu0 %58, %v19
    %v60 = vpop.permute.xlu0 %59
    %v62 = vperm.slane %v36, 0
    %v63 = vadd.f32 %v60, %v62
    %v64 = vmul.f32 %v55, 2.0
    %v65 = vsub.f32 %v63, %v64
    %v66 = vmax.f32 %v65, 0.0
    %v67 = vrsqrt.pop %v66
    %v68 = vmul.f32 %v67, %v66
    %v69 = vmul.f32 %v68, %v67
    %v70 = vmul.f32 0.5, %v69
    %v71 = vsub.f32 1.5, %v70
    %v72 = vmul.f32 %v67, %v71
    %v73 = vmul.f32 %v66, %v72
    %vm74 = vcmp.eq.f32.partialorder %v66, inf
    %v75 = vsel %vm74, %v66, %v73
    %vm76 = vcmp.eq.f32.partialorder %v66, 0.0
    %v77 = vand.u32 %v66, 2147483648
    %v78 = vsel %vm76, %v77, %v75
    %v79 = vsub.f32 1.0, %v78
    %v80 = vmul.f32 %v79, %v79
    %v81 = vmul.f32 %v80, %v80
    %v82 = vmul.f32 %v81, %v80
    %v83 = vmul.f32 %v78, 35.0
    %v84 = vadd.f32 %v83, 18.0
    %v85 = vmul.f32 %v84, %v78
    %v86 = vadd.f32 %v85, 3.0
    %v87 = vmul.f32 %v82, %v86
    %v88 = vperm.slane %v36, 1
    %v89 = vmul.f32 %v87, %v88
    %90 = vst [vmem:[#allocation2] sm:$0xff] %v89
    // Predicated region
    $region18: #{rbf_random_forward.1} parent=1 // pred_check
      _
    $region19: #{rbf_random_forward.1} parent=1 // pred_check_branch
      %92 = sbr.rel (0) target = $region21
    $region20: #{rbf_random_forward.1} parent=1 // pred_region
      %94 = vsyncadd [#allocation3], 0
      %s96 = sshll.u32 [#allocation2], 4
      %s97 = int_to_ptr.vmem [resolvable:$true] %s96
      %s98 = sshll.u32 %s4, 4
      %s99 = int_to_ptr.hbm [resolvable:$true] %s98
      %101 = dma.vmem_to_hbm [thread:$0]  %s97, 128, %s99, [#allocation3]
    $region21: #{rbf_random_forward.1} parent=1 // pred_fallthru
      _
    // Predicated region
    $region22: #{rbf_random_forward.1} parent=1 // pred_check
      _
    $region23: #{rbf_random_forward.1} parent=1 // pred_check_branch
      %103 = sbr.rel (0) target = $region25
    $region24: #{rbf_random_forward.1} parent=1 // pred_region
      %105 = dma.done [#allocation3], 128
    $region25: #{rbf_random_forward.1} parent=1 // pred_fallthru
      _
    %106 = vsyncpa [#allocation3], 1

</llo_original>
